<compile_context>
chip_gen: v6e
topology: v6e:2x2x1
jax: 0.10.0
libtpu: 0.0.40
codegen_flags: <defaults>
</compile_context>

<pallas_src>
import functools
import numpy as np
import jax
import jax.numpy as jnp
from jax import lax
from jax.experimental import pallas as pl
from jax.experimental.pallas import tpu as pltpu

# ----------------------------- model config -----------------------------------
NODE_NORMAL = 0
NODE_OBSTACLE = 1
NODE_TYPE_SIZE = 9

SPACE_DIM = 3                       # 3-D hyperelasticity
LATENT = 128                        # latent_size (production default, lane-dense)
NUM_MP = 3                          # num_mp_steps (default 15, small for demo)
# num_mlp_layers = 2 -> the fused kernels hardcode 2 hidden ReLU layers.

NODE_IN = SPACE_DIM + NODE_TYPE_SIZE          # 12
MESH_EDGE_IN = 2 * (SPACE_DIM + 1)            # 8
WORLD_EDGE_IN = SPACE_DIM + 1                 # 4
OUT_DIM = SPACE_DIM                           # 3

# Row tile for the row-parallel MLP kernels.  At production graph sizes raise
# to 1024-2048 (amortizes ~0.35us/grid-step); on v7x keep n_pad/TILE_M >= 2 so
# both TensorCores get work.
TILE_M = 512
SEG_NODE_TILE = TILE_M       # node-row tile of the segmented sum
SEG_EDGE_BLOCK = 256         # edge block width of the segmented sum (sel = 512x256)
ACT_DTYPE = jnp.bfloat16     # storage dtype of latent activations between kernels


def _round_up(x, m):
    return (x + m - 1) // m * m


# ----------------------------- fused MLP kernels ------------------------------
def _mlp_tail(h1, w_ref, b_ref, res, row0, hid, out_cols, layernorm):
    """ReLU -> Linear+ReLU -> Linear [-> LayerNorm] [+ residual].

    Matmul operands are bf16 (native MXU path); accumulation and the epilogue
    (bias / LayerNorm / residual) stay in f32.
    """
    h = jnp.maximum(h1, 0.0).astype(jnp.bfloat16)
    h = jnp.dot(h, w_ref[row0:row0 + hid, 0:hid],
                preferred_element_type=jnp.float32) + b_ref[1:2, 0:hid]
    h = jnp.maximum(h, 0.0).astype(jnp.bfloat16)
    y = jnp.dot(h, w_ref[row0 + hid:row0 + 2 * hid, 0:out_cols],
                preferred_element_type=jnp.float32) + b_ref[2:3, 0:out_cols]
    if layernorm:
        mu = jnp.mean(y, axis=-1, keepdims=True)
        var = jnp.mean((y - mu) ** 2, axis=-1, keepdims=True)
        y = (y - mu) * lax.rsqrt(var + 1e-5) * b_ref[3:4, 0:out_cols] + b_ref[4:5, 0:out_cols]
    if res is not None:
        y = y + res.astype(jnp.float32)
    return y


def _mlp_kernel(x_ref, w_ref, b_ref, o_ref, *, din_p, hid, out_cols, layernorm):
    """Single-input fused MLP (encoders / decoder).  Packed bf16 W, f32 B."""
    x = x_ref[...]                                   # bf16
    h1 = jnp.dot(x, w_ref[0:din_p, 0:hid],
                 preferred_element_type=jnp.float32) + b_ref[0:1, 0:hid]
    y = _mlp_tail(h1, w_ref, b_ref, None, din_p, hid, out_cols, layernorm)
    o_ref[...] = y.astype(o_ref.dtype)


def _mp_mlp_kernel(a_ref, b_ref, c_ref, w_ref, bias_ref, o_ref, *, latent):
    """MLP over the virtual concat [a, b, c]; residual = a; LayerNorm on.

    The first-layer weight is split into three row blocks so the 3*L-wide
    concatenation never hits HBM; the residual add is fused into the store.
    """
    L = latent
    a = a_ref[...]                                   # bf16
    h1 = (jnp.dot(a, w_ref[0:L, 0:L], preferred_element_type=jnp.float32)
          + jnp.dot(b_ref[...], w_ref[L:2 * L, 0:L],
                    preferred_element_type=jnp.float32)
          + jnp.dot(c_ref[...], w_ref[2 * L:3 * L, 0:L],
                    preferred_element_type=jnp.float32)
          + bias_ref[0:1, 0:L])
    y = _mlp_tail(h1, w_ref, bias_ref, a, 3 * L, L, L, True)
    o_ref[...] = y.astype(o_ref.dtype)


def mlp_forward(x, packed, *, layernorm, out_dtype):
    """x: (rows, din) with rows % TILE_M == 0.  Returns (rows, dout)."""
    W, B = packed["W"], packed["B"]
    din_p, hid, dout, width = packed["din_p"], packed["hid"], packed["dout"], packed["width"]
    out_cols = width                 # lane-dense store; slice dout afterwards
    assert (not layernorm) or dout == width
    n, din = x.shape
    assert n % TILE_M == 0, n
    x = x.astype(ACT_DTYPE)
    if din != din_p:                 # pad features to a 16-aligned width
        x = jnp.pad(x, ((0, 0), (0, din_p - din)))
    kernel = functools.partial(_mlp_kernel, din_p=din_p, hid=hid,
                               out_cols=out_cols, layernorm=layernorm)
    out = pl.pallas_call(
        kernel,
        out_shape=jax.ShapeDtypeStruct((n, out_cols), out_dtype),
        grid=(n // TILE_M,),
        in_specs=[
            pl.BlockSpec((TILE_M, din_p), lambda i: (i, 0)),
            pl.BlockSpec(W.shape, lambda i: (0, 0)),
            pl.BlockSpec(B.shape, lambda i: (0, 0)),
        ],
        out_specs=pl.BlockSpec((TILE_M, out_cols), lambda i: (i, 0)),
        compiler_params=pltpu.CompilerParams(dimension_semantics=("parallel",)),
    )(x, W, B)
    return out if out_cols == dout else out[:, :dout]


def mp_mlp_forward(a, b, c, packed, out_dtype):
    """y = a + LN(MLP(concat[a, b, c])) without materializing the concat."""
    W, B = packed["W"], packed["B"]
    L = packed["hid"]
    n = a.shape[0]
    assert n % TILE_M == 0, n
    row = pl.BlockSpec((TILE_M, L), lambda i: (i, 0))
    return pl.pallas_call(
        functools.partial(_mp_mlp_kernel, latent=L),
        out_shape=jax.ShapeDtypeStruct((n, L), out_dtype),
        grid=(n // TILE_M,),
        in_specs=[row, row, row,
                  pl.BlockSpec(W.shape, lambda i: (0, 0)),
                  pl.BlockSpec(B.shape, lambda i: (0, 0))],
        out_specs=row,
        compiler_params=pltpu.CompilerParams(dimension_semantics=("parallel",)),
    )(a, b, c, W, B)


# ----------------------------- segmented edge->node sum -----------------------
def _segsum_kernel(off_ref, cnt_ref, dst_ref, e_ref, o_ref, acc_ref):
    i = pl.program_id(0)          # node row tile
    j = pl.program_id(1)          # edge block within this node tile's range

    @pl.when(j == 0)
    def _():
        acc_ref[...] = jnp.zeros_like(acc_ref)

    @pl.when(j < cnt_ref[i])
    def _():
        nt = acc_ref.shape[0]
        eb = dst_ref.shape[1]
        rows = i * nt + lax.broadcasted_iota(jnp.int32, (nt, eb), 0)
        # padded edges carry dst = -1 and never match -> implicit masking.
        # 0/1 values are exact in bf16 -> fast bf16 MXU path, half the spill.
        sel = (rows == dst_ref[...]).astype(jnp.bfloat16)     # (nodes, edges)
        acc_ref[...] += jnp.dot(sel, e_ref[...],
                                preferred_element_type=jnp.float32)

    @pl.when(j == pl.num_programs(1) - 1)
    def _():
        o_ref[...] = acc_ref[...].astype(o_ref.dtype)


def segment_sum_pallas(edge_feat, dst_row, blk_off, blk_cnt, max_blocks, n_pad,
                       out_dtype):
    """sum_{e : dst[e] == v} edge_feat[e] for every node v.

    edge_feat rows are sorted by destination; blk_off/blk_cnt (scalar-prefetched)
    give, per node row tile, the first edge block and the number of edge blocks
    that can contain its edges, so work is linear in the number of edges.
    """
    e_pad, L = edge_feat.shape
    assert e_pad % SEG_EDGE_BLOCK == 0 and n_pad % SEG_NODE_TILE == 0
    num_n_blocks = n_pad // SEG_NODE_TILE

    # For j >= cnt[i] repeat the previous block so Pallas skips the DMA.
    def blk(j, off_i, cnt_i):
        return off_i + jnp.minimum(j, jnp.maximum(cnt_i - 1, 0))

    def dst_map(i, j, off, cnt):
        return (0, blk(j, off[i], cnt[i]))

    def e_map(i, j, off, cnt):
        return (blk(j, off[i], cnt[i]), 0)

    return pl.pallas_call(
        _segsum_kernel,
        out_shape=jax.ShapeDtypeStruct((n_pad, L), out_dtype),
        grid_spec=pltpu.PrefetchScalarGridSpec(
            num_scalar_prefetch=2,
            grid=(num_n_blocks, max_blocks),
            in_specs=[
                pl.BlockSpec((1, SEG_EDGE_BLOCK), dst_map),
                pl.BlockSpec((SEG_EDGE_BLOCK, L), e_map),
            ],
            out_specs=pl.BlockSpec((SEG_NODE_TILE, L), lambda i, j, off, cnt: (i, 0)),
            scratch_shapes=[pltpu.VMEM((SEG_NODE_TILE, L), jnp.float32)],
        ),
        compiler_params=pltpu.CompilerParams(
            dimension_semantics=("parallel", "arbitrary")),
    )(blk_off, blk_cnt, dst_row, edge_feat)


def segment_blocks(dst_sorted, n_pad, e_pad):
    """Host-side: per node row tile, first edge block + edge block count."""
    dst_sorted = np.asarray(dst_sorted)
    num_n_blocks = n_pad // SEG_NODE_TILE
    offs = np.zeros((num_n_blocks,), np.int32)
    cnts = np.zeros((num_n_blocks,), np.int32)
    for i in range(num_n_blocks):
        lo = int(np.searchsorted(dst_sorted, i * SEG_NODE_TILE, side="left"))
        hi = int(np.searchsorted(dst_sorted, (i + 1) * SEG_NODE_TILE, side="left"))
        if hi > lo:
            offs[i] = lo // SEG_EDGE_BLOCK
            cnts[i] = (hi - 1) // SEG_EDGE_BLOCK - offs[i] + 1
    max_blocks = max(1, int(cnts.max())) if cnts.size else 1
    return jnp.asarray(offs, jnp.int32), jnp.asarray(cnts, jnp.int32), max_blocks


# ----------------------------- pairwise closeness mask ------------------------
def _close_mask_kernel(a_ref, bt_ref, o_ref, *, thresh2):
    """Direct form sum_d (a_i_d - b_j_d)^2 on the VPU, thresholded in-kernel
    and stored as an int8 mask (4x less HBM writeback than f32 distances)."""
    a = a_ref[...]                                  # (tm, D)
    bt = bt_ref[...]                                # (D, tn)
    d = a.shape[1]
    acc = jnp.zeros((a.shape[0], bt.shape[1]), jnp.float32)
    for k in range(d):
        diff = a[:, k:k + 1] - bt[k:k + 1, :]
        acc = acc + diff * diff
    o_ref[...] = (acc < thresh2).astype(jnp.int8)


def pairwise_close_mask(a, b, thresh, tile_m=256, tile_n=1024):
    """a: (M, D), b: (N, D) float32 -> (M, N) int8 mask of dist^2 < thresh^2."""
    # TODO(synk): torch reference uses float64 here; TPU kernel runs in float32
    # (the direct (a-b)^2 form keeps f32 close to the f64 reference).
    m, d = a.shape
    n = b.shape[0]
    mp = max(_round_up(m, 32), 32)                  # 32-aligned sublanes for i8
    np_ = max(_round_up(n, 128), 128)
    tm = min(tile_m, mp)
    tn = min(tile_n, np_)
    mp = _round_up(mp, tm)
    np_ = _round_up(np_, tn)
    a_p = jnp.pad(a, ((0, mp - m), (0, 0)))
    bt_p = jnp.pad(b, ((0, np_ - n), (0, 0))).T     # (D, Np)
    out = pl.pallas_call(
        functools.partial(_close_mask_kernel, thresh2=float(thresh) * float(thresh)),
        out_shape=jax.ShapeDtypeStruct((mp, np_), jnp.int8),
        grid=(mp // tm, np_ // tn),
        in_specs=[
            pl.BlockSpec((tm, d), lambda i, j: (i, 0)),
            pl.BlockSpec((d, tn), lambda i, j: (0, j)),
        ],
        out_specs=pl.BlockSpec((tm, tn), lambda i, j: (i, j)),
        compiler_params=pltpu.CompilerParams(
            dimension_semantics=("parallel", "parallel")),
    )(a_p, bt_p)
    return out[:m, :n]


# ----------------------------- graph construction (host glue) ----------------
def cells_to_edges(cells):
    """Bidirectional, de-duplicated edges from cell connectivity."""
    cells = np.asarray(cells)
    k = cells.shape[1]
    pairs = []
    for a in range(k):
        for b in range(k):
            if a != b:
                pairs.append(np.stack([cells[:, a], cells[:, b]], axis=1))
    pairs = np.unique(np.concatenate(pairs, axis=0), axis=0)
    return pairs[:, 0], pairs[:, 1]


def construct_world_edges(node_offs, world_pos, node_type, thresh=0.03):
    node_offs = np.asarray(node_offs)
    world_pos_np = np.asarray(world_pos)
    node_type_np = np.asarray(node_type).reshape(-1)
    srcss, dstss = [], []
    for bi in range(len(node_offs)):
        off = int(node_offs[bi])
        end = int(node_offs[bi + 1]) if bi < len(node_offs) - 1 else world_pos_np.shape[0]
        b_type = node_type_np[off:end]
        b_pos = world_pos_np[off:end]
        deformable = b_type != NODE_OBSTACLE
        actuator = b_type == NODE_OBSTACLE
        d_idx = np.arange(b_type.shape[0])[deformable]
        a_idx = np.arange(b_type.shape[0])[actuator]
        if a_idx.size == 0 or d_idx.size == 0:
            continue
        mask = np.asarray(pairwise_close_mask(
            jnp.asarray(b_pos[actuator], jnp.float32),
            jnp.asarray(b_pos[deformable], jnp.float32), thresh))
        mi, ni = np.nonzero(mask)
        srcs = a_idx[mi] + off
        dsts = d_idx[ni] + off
        srcss += [srcs, dsts]
        dstss += [dsts, srcs]
    if not srcss:
        return np.zeros((0,), np.int64), np.zeros((0,), np.int64)
    return np.concatenate(srcss), np.concatenate(dstss)


# ----------------------------- parameters ------------------------------------
def _init_linear(key, fan_in, fan_out):
    kw, kb = jax.random.split(key)
    bound = 1.0 / np.sqrt(fan_in)
    w = jax.random.uniform(kw, (fan_in, fan_out), jnp.float32, -bound, bound)
    b = jax.random.uniform(kb, (1, fan_out), jnp.float32, -bound, bound)
    return w, b


def init_mlp(key, din, hidden, dout):
    k1, k2, k3 = jax.random.split(key, 3)
    w1, b1 = _init_linear(k1, din, hidden)
    w2, b2 = _init_linear(k2, hidden, hidden)
    w3, b3 = _init_linear(k3, hidden, dout)
    gamma = jnp.ones((1, dout), jnp.float32)
    beta = jnp.zeros((1, dout), jnp.float32)
    return (w1, b1, w2, b2, w3, b3, gamma, beta)


def pack_mlp(mlp):
    """Coalesce the 8 small parameter arrays into one bf16 weight slab + one
    f32 bias/LN slab (statically sliced inside the kernel).  Row offsets are
    16-aligned so bf16 sublane-packed slices stay tile-aligned."""
    w1, b1, w2, b2, w3, b3, g, beta = mlp
    din, hid = w1.shape
    dout = w3.shape[1]
    din_p = _round_up(din, 16)
    width = max(hid, dout)

    def pw(w, rows):
        return jnp.pad(w, ((0, rows - w.shape[0]), (0, width - w.shape[1])))

    def pb(v):
        return jnp.pad(v, ((0, 0), (0, width - v.shape[1])))

    W = jnp.concatenate([pw(w1, din_p), pw(w2, hid), pw(w3, hid)],
                        axis=0).astype(jnp.bfloat16)
    B = jnp.concatenate([pb(b1), pb(b2), pb(b3), pb(g), pb(beta),
                         jnp.zeros((3, width), jnp.float32)], axis=0)   # (8, width)
    return dict(W=W, B=B, din_p=din_p, hid=hid, dout=dout, width=width)


def _norm_params(d):
    # InvertableNorm starts with zero accumulated stats -> mean 0, std 1.
    return {"mean": jnp.zeros((d,), jnp.float32), "std": jnp.ones((d,), jnp.float32)}


def init_params(key):
    keys = jax.random.split(key, 4 + 3 * NUM_MP)
    params = {
        "node_enc": pack_mlp(init_mlp(keys[0], NODE_IN, LATENT, LATENT)),
        "mesh_enc": pack_mlp(init_mlp(keys[1], MESH_EDGE_IN, LATENT, LATENT)),
        "world_enc": pack_mlp(init_mlp(keys[2], WORLD_EDGE_IN, LATENT, LATENT)),
        "decoder": pack_mlp(init_mlp(keys[3], LATENT, LATENT, OUT_DIM)),
        "mp": [],
        "node_norm": _norm_params(NODE_IN),
        "mesh_edge_norm": _norm_params(MESH_EDGE_IN),
        "world_edge_norm": _norm_params(WORLD_EDGE_IN),
        "out_norm": _norm_params(OUT_DIM),
    }
    for s in range(NUM_MP):
        params["mp"].append({
            "mesh_edge": pack_mlp(init_mlp(keys[4 + 3 * s], 3 * LATENT, LATENT, LATENT)),
            "world_edge": pack_mlp(init_mlp(keys[5 + 3 * s], 3 * LATENT, LATENT, LATENT)),
            "node": pack_mlp(init_mlp(keys[6 + 3 * s], 3 * LATENT, LATENT, LATENT)),
        })
    return params


def inv_norm_fwd(x, p):
    return (x - p["mean"]) / p["std"]


def inv_norm_inverse(x, p):
    return x * p["std"] + p["mean"]


# ----------------------------- padding helpers -------------------------------
def pad_rows(x, multiple=TILE_M):
    n = x.shape[0]
    n_pad = max(_round_up(n, multiple), multiple)
    return jnp.pad(x, ((0, n_pad - n), (0, 0)))


def pad_idx_np(idx, fill, target_len):
    idx = np.asarray(idx, np.int32)
    return np.pad(idx, (0, target_len - idx.shape[0]), constant_values=fill)


# ----------------------------- forward ----------------------------------------
def hyperel_forward(params, batch, unnorm=True):
    node_type = jnp.asarray(batch["node_type"], jnp.int32)
    world_pos = jnp.asarray(batch["world_pos"], jnp.float32)
    target_world_pos = jnp.asarray(batch["target_world_pos"], jnp.float32)
    mesh_pos = jnp.asarray(batch["mesh_pos"], jnp.float32)
    n_nodes = world_pos.shape[0]

    # ---- node features: masked velocity + one-hot node type ----
    oh = jax.nn.one_hot(node_type, NODE_TYPE_SIZE, dtype=jnp.float32)
    known_vel = target_world_pos - world_pos
    known_vel = jnp.where((node_type == NODE_NORMAL)[:, None], known_vel, 0.0)
    node_feat = jnp.concatenate([known_vel, oh], axis=-1)              # (N, 12)

    # ---- mesh edges (sorted by destination for the segmented-sum kernel) ----
    srcs, dsts = cells_to_edges(batch["cells"])
    order = np.argsort(dsts, kind="stable")
    srcs, dsts = srcs[order], dsts[order]
    srcs_j = jnp.asarray(srcs, jnp.int32)
    dsts_j = jnp.asarray(dsts, jnp.int32)
    rel_wm = world_pos[srcs_j] - world_pos[dsts_j]
    rel_m = mesh_pos[srcs_j] - mesh_pos[dsts_j]
    mesh_edge_feat = jnp.concatenate([
        rel_wm, jnp.linalg.norm(rel_wm, axis=-1, keepdims=True),
        rel_m, jnp.linalg.norm(rel_m, axis=-1, keepdims=True)], axis=-1)  # (E, 8)

    # ---- world edges (proximity-based, dynamic shape -> host glue) ----
    wsrcs, wdsts = construct_world_edges(batch["node_offs"], world_pos, node_type)
    worder = np.argsort(wdsts, kind="stable")
    wsrcs, wdsts = wsrcs[worder], wdsts[worder]
    wsrcs_j = jnp.asarray(wsrcs, jnp.int32)
    wdsts_j = jnp.asarray(wdsts, jnp.int32)
    rel_w = world_pos[wsrcs_j] - world_pos[wdsts_j]
    world_edge_feat = jnp.concatenate(
        [rel_w, jnp.linalg.norm(rel_w, axis=-1, keepdims=True)], axis=-1)  # (Ew, 4)

    # ---- input normalizers ----
    node_feat = inv_norm_fwd(node_feat, params["node_norm"])
    mesh_edge_feat = inv_norm_fwd(mesh_edge_feat, params["mesh_edge_norm"])
    world_edge_feat = inv_norm_fwd(world_edge_feat, params["world_edge_norm"])

    # ---- pad rows to the kernel row tile ----
    node_feat_p = pad_rows(node_feat)
    n_pad = node_feat_p.shape[0]
    mesh_feat_p = pad_rows(mesh_edge_feat)
    world_feat_p = pad_rows(world_edge_feat)
    e_mesh_pad = mesh_feat_p.shape[0]
    e_world_pad = world_feat_p.shape[0]

    msrc_g = jnp.asarray(pad_idx_np(srcs, 0, e_mesh_pad), jnp.int32)
    mdst_g = jnp.asarray(pad_idx_np(dsts, 0, e_mesh_pad), jnp.int32)
    wsrc_g = jnp.asarray(pad_idx_np(wsrcs, 0, e_world_pad), jnp.int32)
    wdst_g = jnp.asarray(pad_idx_np(wdsts, 0, e_world_pad), jnp.int32)
    # padded dst = -1 -> never matches a node row in the segmented-sum kernel
    mdst_seg = jnp.asarray(pad_idx_np(dsts, -1, e_mesh_pad), jnp.int32).reshape(1, -1)
    wdst_seg = jnp.asarray(pad_idx_np(wdsts, -1, e_world_pad), jnp.int32).reshape(1, -1)
    m_off, m_cnt, m_maxblk = segment_blocks(dsts, n_pad, e_mesh_pad)
    w_off, w_cnt, w_maxblk = segment_blocks(wdsts, n_pad, e_world_pad)

    # ---- encode (bf16 latent storage between kernels, f32 epilogue inside) ----
    x = mlp_forward(node_feat_p, params["node_enc"], layernorm=True,
                    out_dtype=ACT_DTYPE)
    e_mesh = mlp_forward(mesh_feat_p, params["mesh_enc"], layernorm=True,
                         out_dtype=ACT_DTYPE)
    e_world = mlp_forward(world_feat_p, params["world_enc"], layernorm=True,
                          out_dtype=ACT_DTYPE)

    # ---- process: NUM_MP message-passing blocks (residuals fused in-kernel) ----
    for step in params["mp"]:
        # TODO(synk): the x[src]/x[dst] gathers remain XLA gathers; an in-kernel
        # VMEM-resident-table gather would remove 4 HBM round-trips per MP step
        # but needs a data-dependent row gather not expressible as a BlockSpec.
        e_mesh = mp_mlp_forward(e_mesh, x[msrc_g], x[mdst_g],
                                step["mesh_edge"], ACT_DTYPE)
        e_world = mp_mlp_forward(e_world, x[wsrc_g], x[wdst_g],
                                 step["world_edge"], ACT_DTYPE)
        agg_mesh = segment_sum_pallas(e_mesh, mdst_seg, m_off, m_cnt, m_maxblk,
                                      n_pad, ACT_DTYPE)
        agg_world = segment_sum_pallas(e_world, wdst_seg, w_off, w_cnt, w_maxblk,
                                       n_pad, ACT_DTYPE)
        x = mp_mlp_forward(x, agg_mesh, agg_world, step["node"], ACT_DTYPE)

    # ---- decode (lane-dense 128-wide store, sliced to 3 afterwards) ----
    out = mlp_forward(x, params["decoder"], layernorm=False,
                      out_dtype=jnp.float32)[:n_nodes]
    if unnorm:
        out = inv_norm_inverse(out, params["out_norm"])
    return out


# ----------------------------- demo --------------------------------------------
if __name__ == "__main__":
    key = jax.random.PRNGKey(0)
    kp, k1, k2, k3 = jax.random.split(key, 4)

    n_per, batch_size = 16, 2
    n = n_per * batch_size
    node_offs = np.array([0, n_per], dtype=np.int64)
    node_type = np.zeros((n,), dtype=np.int32)
    node_type[0:4] = NODE_OBSTACLE            # a few actuator nodes per sample
    node_type[n_per:n_per + 4] = NODE_OBSTACLE

    cells = []
    for off in (0, n_per):
        for i in range(n_per - 3):            # tetrahedral cells (4 nodes each)
            cells.append([off + i, off + i + 1, off + i + 2, off + i + 3])
    cells = np.asarray(cells, dtype=np.int64)

    # small spatial scale so some world edges fall under the 0.03 threshold
    world_pos = jax.random.uniform(k1, (n, 3), jnp.float32) * 0.02
    mesh_pos = jax.random.uniform(k2, (n, 3), jnp.float32)
    target_world_pos = world_pos + 0.005 * jax.random.normal(k3, (n, 3), jnp.float32)

    params = init_params(kp)
    batch = dict(node_type=node_type, world_pos=world_pos,
                 target_world_pos=target_world_pos, mesh_pos=mesh_pos,
                 cells=cells, node_offs=node_offs)

    out = hyperel_forward(params, batch, unnorm=True)
    out = jax.block_until_ready(out)
    assert out.shape == (n, OUT_DIM) and out.dtype == jnp.float32
    assert bool(jnp.all(jnp.isfinite(out)))
    print("KERNEL_OK")
</pallas_src>

<mosaic_0001>
module attributes {stable_mosaic.version = 11 : i64} {
  func.func @_close_mask_kernel(%arg0: i32, %arg1: i32, %arg2: memref<32x3xf32, #tpu.memory_space<vmem>>, %arg3: memref<3x128xf32, #tpu.memory_space<vmem>>, %arg4: memref<32x128xi8, #tpu.memory_space<vmem>>) attributes {dimension_semantics = [#tpu.dimension_semantics<parallel>, #tpu.dimension_semantics<parallel>], iteration_bounds = array<i64: 1, 1>, scalar_prefetch = 0 : i64, scratch_operands = 0 : i64, tpu.core_type = #tpu.core_type<tc>, window_params = [{transform_indices = @transform_0, window_bounds = array<i64: 32, 3>}, {transform_indices = @transform_1, window_bounds = array<i64: 3, 128>}, {transform_indices = @transform_2, window_bounds = array<i64: 32, 128>}]} {
    %c0 = arith.constant 0 : index
    %c0_0 = arith.constant 0 : index
    %0 = vector.load %arg2[%c0, %c0_0] : memref<32x3xf32, #tpu.memory_space<vmem>>, vector<32x3xf32>
    %c0_1 = arith.constant 0 : index
    %c0_2 = arith.constant 0 : index
    %1 = vector.load %arg3[%c0_1, %c0_2] : memref<3x128xf32, #tpu.memory_space<vmem>>, vector<3x128xf32>
    %cst = arith.constant 0.000000e+00 : f32
    %2 = vector.broadcast %cst : f32 to vector<32x128xf32>
    %3 = vector.extract_strided_slice %0 {offsets = [0, 0], sizes = [32, 1], strides = [1, 1]} : vector<32x3xf32> to vector<32x1xf32>
    %4 = vector.extract_strided_slice %1 {offsets = [0, 0], sizes = [1, 128], strides = [1, 1]} : vector<3x128xf32> to vector<1x128xf32>
    %5 = vector.broadcast %3 : vector<32x1xf32> to vector<32x128xf32>
    %6 = vector.broadcast %4 : vector<1x128xf32> to vector<32x128xf32>
    %7 = arith.subf %5, %6 : vector<32x128xf32>
    %8 = arith.mulf %7, %7 : vector<32x128xf32>
    %9 = arith.addf %2, %8 : vector<32x128xf32>
    %10 = vector.extract_strided_slice %0 {offsets = [0, 1], sizes = [32, 1], strides = [1, 1]} : vector<32x3xf32> to vector<32x1xf32>
    %11 = vector.extract_strided_slice %1 {offsets = [1, 0], sizes = [1, 128], strides = [1, 1]} : vector<3x128xf32> to vector<1x128xf32>
    %12 = vector.broadcast %10 : vector<32x1xf32> to vector<32x128xf32>
    %13 = vector.broadcast %11 : vector<1x128xf32> to vector<32x128xf32>
    %14 = arith.subf %12, %13 : vector<32x128xf32>
    %15 = arith.mulf %14, %14 : vector<32x128xf32>
    %16 = arith.addf %9, %15 : vector<32x128xf32>
    %17 = vector.extract_strided_slice %0 {offsets = [0, 2], sizes = [32, 1], strides = [1, 1]} : vector<32x3xf32> to vector<32x1xf32>
    %18 = vector.extract_strided_slice %1 {offsets = [2, 0], sizes = [1, 128], strides = [1, 1]} : vector<3x128xf32> to vector<1x128xf32>
    %19 = vector.broadcast %17 : vector<32x1xf32> to vector<32x128xf32>
    %20 = vector.broadcast %18 : vector<1x128xf32> to vector<32x128xf32>
    %21 = arith.subf %19, %20 : vector<32x128xf32>
    %22 = arith.mulf %21, %21 : vector<32x128xf32>
    %23 = arith.addf %16, %22 : vector<32x128xf32>
    %cst_3 = arith.constant 8.99999984E-4 : f32
    %24 = vector.broadcast %cst_3 : f32 to vector<32x128xf32>
    %25 = arith.cmpf olt, %23, %24 : vector<32x128xf32>
    %26 = arith.extui %25 : vector<32x128xi1> to vector<32x128xi8>
    %c0_4 = arith.constant 0 : index
    %c0_5 = arith.constant 0 : index
    %27 = vector.load %arg4[%c0_4, %c0_5] : memref<32x128xi8, #tpu.memory_space<vmem>>, vector<32x128xi8>
    tpu.vector_store %arg4[%c0_4, %c0_5], %26 {strides = array<i32>} : memref<32x128xi8, #tpu.memory_space<vmem>>, vector<32x128xi8>,
    return
  }
  func.func @transform_0(%arg0: i32, %arg1: i32) -> (i32, i32) {
    %c0_i32 = arith.constant 0 : i32
    %c0_i32_0 = arith.constant 0 : i32
    return %arg0, %c0_i32 : i32, i32
  }
  func.func @transform_1(%arg0: i32, %arg1: i32) -> (i32, i32) {
    %c0_i32 = arith.constant 0 : i32
    %c0_i32_0 = arith.constant 0 : i32
    return %c0_i32, %arg1 : i32, i32
  }
  func.func @transform_2(%arg0: i32, %arg1: i32) -> (i32, i32) {
    %c0_i32 = arith.constant 0 : i32
    return %arg0, %arg1 : i32, i32
  }
}

</mosaic_0001>

<llo_original>
// kernel: tpu_custom_call.1
$region0: #{tpu_custom_call.1}
  #allocation0 [shape = 'u32[]', space=smem, size = 0x4, offset = 0x4, fixed_abs, tag = 'smem constant byte address 0x4 - core index']
  #allocation1 [shape = 'u32[144,128]{1,0:T(1,128)}', space=vmem, size = 0x12000, scoped, tag = 'internal scratch']
  %s0 = inlined_call_operand.vmem [shape: f32[32,3], index: 0, kind: input, shape index: {}]
  %s1 = inlined_call_operand.vmem [shape: f32[3,128], index: 1, kind: input, shape index: {}]
  %s2 = inlined_call_operand.hbm [shape: s8[32,128], index: 2, kind: output, shape index: {}]
  %s3 = sld [smem:[#allocation0]]
  $region18: #{tpu_custom_call.1} parent=0
    _
  %s5 = ssub.s32 1, %s3
  %s6 = scalar_select 0, %s5, %s3
  $region1: #{tpu_custom_call.1} parent=0
    #allocation2 [shape = 'u8[4096]{0}', space=vmem, size = 0x1000, scoped, tag = 'output window, operand 0, single buffered']
    #allocation3 [shape = 's32[1]{0}', space=sflag, size = 0x4, scoped, tag = 'scoped memory for tpu_custom_call.1']
    %7 = vsyncpa [#allocation3], 0
    // Predicated region
    $region2: #{tpu_custom_call.1} parent=1 // pred_check
      _
    $region3: #{tpu_custom_call.1} parent=1 // pred_check_branch
      %9 = sbr.rel (0) target = $region5
    $region4: #{tpu_custom_call.1} parent=1 // pred_region
      _
    $region5: #{tpu_custom_call.1} parent=1 // pred_fallthru
      _
    // Predicated region
    $region6: #{tpu_custom_call.1} parent=1 // pred_check
      _
    $region7: #{tpu_custom_call.1} parent=1 // pred_check_branch
      %11 = sbr.rel (0) target = $region9
    $region8: #{tpu_custom_call.1} parent=1 // pred_region
      _
    $region9: #{tpu_custom_call.1} parent=1 // pred_fallthru
      _
    %v14 = vld [vmem:[%s0] sm:$0xff]
    %v15 = vld [vmem:[%s0 + $0x8] sm:$0xff]
    %v16 = vld [vmem:[%s0 + $0x10] sm:$0xff]
    %v17 = vld [vmem:[%s0 + $0x18] sm:$0xff]
    %v18 = vld [vmem:[%s1] sm:$0x7]
    %20 = vset.pattern.permute.xlu0 0
    %21 = vperm.xlu0 %20, %v14
    %v22 = vpop.permute.xlu0 %21
    %25 = vset.pattern.permute.xlu0 0
    %26 = vperm.xlu0 %25, %v15
    %v27 = vpop.permute.xlu0 %26
    %30 = vset.pattern.permute.xlu0 0
    %31 = vperm.xlu0 %30, %v16
    %v32 = vpop.permute.xlu0 %31
    %35 = vset.pattern.permute.xlu0 0
    %36 = vperm.xlu0 %35, %v17
    %v37 = vpop.permute.xlu0 %36
    %v39 = vlaneseq
    %v40 = vshrl.u32 %v39, 7
    %v41 = vsub.s32 0, %v40
    %v42 = vrot.slane %v18, %v41
    %v43 = vsub.f32 %v22, %v42
    %v44 = vsub.f32 %v27, %v42
    %v45 = vsub.f32 %v32, %v42
    %v46 = vsub.f32 %v37, %v42
    %v47 = vmul.f32 %v43, %v43
    %v48 = vmul.f32 %v44, %v44
    %v49 = vmul.f32 %v45, %v45
    %v50 = vmul.f32 %v46, %v46
    %v51 = vadd.f32 %v47, 0.0
    %v52 = vadd.f32 %v48, 0.0
    %v53 = vadd.f32 %v49, 0.0
    %v54 = vadd.f32 %v50, 0.0
    %55 = vset.pattern.permute.xlu0 1
    %56 = vperm.xlu0 %55, %v14
    %v57 = vpop.permute.xlu0 %56
    %59 = vset.pattern.permute.xlu0 1
    %60 = vperm.xlu0 %59, %v15
    %v61 = vpop.permute.xlu0 %60
    %63 = vset.pattern.permute.xlu0 1
    %64 = vperm.xlu0 %63, %v16
    %v65 = vpop.permute.xlu0 %64
    %67 = vset.pattern.permute.xlu0 1
    %68 = vperm.xlu0 %67, %v17
    %v69 = vpop.permute.xlu0 %68
    %v71 = vlaneseq
    %v72 = vshrl.u32 %v71, 7
    %v73 = vsub.s32 1, %v72
    %v74 = vrot.slane %v18, %v73
    %v75 = vsub.f32 %v57, %v74
    %v76 = vsub.f32 %v61, %v74
    %v77 = vsub.f32 %v65, %v74
    %v78 = vsub.f32 %v69, %v74
    %v79 = vmul.f32 %v75, %v75
    %v80 = vmul.f32 %v76, %v76
    %v81 = vmul.f32 %v77, %v77
    %v82 = vmul.f32 %v78, %v78
    %v83 = vadd.f32 %v51, %v79
    %v84 = vadd.f32 %v52, %v80
    %v85 = vadd.f32 %v53, %v81
    %v86 = vadd.f32 %v54, %v82
    %87 = vset.pattern.permute.xlu0 2
    %88 = vperm.xlu0 %87, %v14
    %v89 = vpop.permute.xlu0 %88
    %91 = vset.pattern.permute.xlu0 2
    %92 = vperm.xlu0 %91, %v15
    %v93 = vpop.permute.xlu0 %92
    %95 = vset.pattern.permute.xlu0 2
    %96 = vperm.xlu0 %95, %v16
    %v97 = vpop.permute.xlu0 %96
    %99 = vset.pattern.permute.xlu0 2
    %100 = vperm.xlu0 %99, %v17
    %v101 = vpop.permute.xlu0 %100
    %v103 = vlaneseq
    %v104 = vshrl.u32 %v103, 7
    %v105 = vsub.s32 2, %v104
    %v106 = vrot.slane %v18, %v105
    %v107 = vsub.f32 %v89, %v106
    %v108 = vsub.f32 %v93, %v106
    %v109 = vsub.f32 %v97, %v106
    %v110 = vsub.f32 %v101, %v106
    %v111 = vmul.f32 %v107, %v107
    %v112 = vmul.f32 %v108, %v108
    %v113 = vmul.f32 %v109, %v109
    %v114 = vmul.f32 %v110, %v110
    %v115 = vadd.f32 %v83, %v111
    %v116 = vadd.f32 %v84, %v112
    %v117 = vadd.f32 %v85, %v113
    %v118 = vadd.f32 %v86, %v114
    %vm119 = vcmp.lt.f32.partialorder %v115, 0.0009
    %vm120 = vcmp.lt.f32.partialorder %v116, 0.0009
    %vm121 = vcmp.lt.f32.partialorder %v117, 0.0009
    %vm122 = vcmp.lt.f32.partialorder %v118, 0.0009
    %vm123 = vmpackc.low %vm120, %vm119
    %vm124 = vmpackc.low %vm122, %vm121
    %vm125 = vmpackc.even %vm124, %vm123
    %v126 = vsel %vm125, 16843009, 0
    %127 = vst [vmem:[#allocation2] sm:$0xff] %v126
    // Predicated region
    $region10: #{tpu_custom_call.1} parent=1 // pred_check
      _
    $region11: #{tpu_custom_call.1} parent=1 // pred_check_branch
      %129 = sbr.rel (0) target = $region13
    $region12: #{tpu_custom_call.1} parent=1 // pred_region
      %s131 = ssub.s32 128, 128
      %132 = vsyncadd [#allocation3], %s131
      %s134 = sshll.u32 [#allocation2], 4
      %s135 = int_to_ptr.vmem [resolvable:$true] %s134
      %137 = dma.vmem_to_hbm [thread:$0]  %s135, 128, %s2, [#allocation3]
    $region13: #{tpu_custom_call.1} parent=1 // pred_fallthru
      _
    // Predicated region
    $region14: #{tpu_custom_call.1} parent=1 // pred_check
      _
    $region15: #{tpu_custom_call.1} parent=1 // pred_check_branch
      %139 = sbr.rel (0) target = $region17
    $region16: #{tpu_custom_call.1} parent=1 // pred_region
      %140 = dma.done [#allocation3], 128
    $region17: #{tpu_custom_call.1} parent=1 // pred_fallthru
      _
    %141 = vsyncpa [#allocation3], 1

</llo_original>
